<compile_context>
chip_gen: v6e
topology: v6e:2x2x1
jax: 0.10.0
libtpu: 0.0.40
codegen_flags: <defaults>
</compile_context>

<pallas_src>
import functools

import jax
import jax.numpy as jnp
from jax.experimental import pallas as pl
from jax.experimental.pallas import tpu as pltpu


def _stru_decoder_kernel(z_ref, adj_out_ref, *, compute_dtype):
    """One grid step = Bb graphs.

    z_ref:       (Bb, N, Dz)  VMEM
    adj_out_ref: (Bb, N, N)   VMEM
    """
    z = z_ref[...].astype(compute_dtype)
    # Batched Gram matrix on the MXU (contraction over Dz), f32 accumulation.
    s = jnp.einsum("bnd,bmd->bnm", z, z, preferred_element_type=jnp.float32)
    adj_out_ref[...] = jax.nn.sigmoid(s).astype(adj_out_ref.dtype)


def _choose_block_b(B, N, Dz, vmem_budget_bytes):
    """Pick graphs-per-step Bb: largest divisor of B such that
       (a) the double-buffered per-step working set fits the VMEM budget, and
       (b) there are >= 2 grid steps when B >= 2 (v7x dual-TensorCore split)."""
    bytes_per_graph = 4 * (2 * (N * Dz + N * N)   # double-buffered input + output
                           + 2 * N * N)           # f32 scores + sigmoid temp
    cap = max(1, vmem_budget_bytes // bytes_per_graph)
    if B >= 2:
        cap = min(cap, (B + 1) // 2)
    for bb in range(min(cap, B), 0, -1):
        if B % bb == 0:
            return bb
    return 1


def stru_decoder_forward(z, adj=None, *, compute_dtype=jnp.float32,
                         vmem_budget_bytes=8 * 1024 * 1024):
    """adj_ = sigmoid(z @ z^T), batched over graphs.

    z:   (B, N, Dz) float32 node embeddings.
    adj: accepted for parity with the PyTorch forward signature; unused by the
         module, so it is not passed to (or copied by) the kernel.
    """
    del adj  # unused by Stru_Decoder_.forward
    B, N, Dz = z.shape
    Bb = _choose_block_b(B, N, Dz, vmem_budget_bytes)
    grid = (B // Bb,)

    kernel = functools.partial(_stru_decoder_kernel, compute_dtype=compute_dtype)

    cost = pl.CostEstimate(
        flops=2 * B * N * N * Dz,
        transcendentals=B * N * N,                      # sigmoid
        bytes_accessed=4 * (B * N * Dz + B * N * N),
    )

    return pl.pallas_call(
        kernel,
        out_shape=jax.ShapeDtypeStruct((B, N, N), jnp.float32),
        grid_spec=pltpu.PrefetchScalarGridSpec(
            num_scalar_prefetch=0,
            grid=grid,
            in_specs=[pl.BlockSpec((Bb, N, Dz), lambda b: (b, 0, 0))],
            out_specs=pl.BlockSpec((Bb, N, N), lambda b: (b, 0, 0)),
        ),
        compiler_params=pltpu.CompilerParams(
            dimension_semantics=("parallel",)),
        cost_estimate=cost,
    )(z)


def reference_forward(z, adj=None):
    """Pure-JAX reference mirroring the PyTorch forward."""
    del adj
    s = jnp.einsum("bnd,bmd->bnm", z, z, precision=jax.lax.Precision.HIGHEST)
    return jax.nn.sigmoid(s)


if __name__ == "__main__":
    # Small, deterministic demo shapes. N = 128 is chosen so the (Bb, N, N)
    # output block is naturally lane-dense (128-wide unmasked stores).
    B, N, Dz = 4, 128, 32

    key = jax.random.PRNGKey(0)
    k_z, k_a = jax.random.split(key)
    z = jax.random.normal(k_z, (B, N, Dz), jnp.float32)
    # adj is part of the module's forward signature but unused by it.
    a = jax.random.uniform(k_a, (B, N, N), jnp.float32)
    adj = 0.5 * (a + jnp.transpose(a, (0, 2, 1)))

    ref = reference_forward(z, adj)

    # f32 MXU path (exact-ish), checked tightly.
    out_f32 = jax.block_until_ready(stru_decoder_forward(z, adj))
    assert out_f32.shape == ref.shape and out_f32.dtype == ref.dtype
    assert jnp.allclose(out_f32, ref, rtol=1e-3, atol=1e-3), "f32 mismatch vs reference"

    # bf16-operand / f32-accumulation MXU path (perf option), checked loosely.
    out_bf16 = jax.block_until_ready(
        stru_decoder_forward(z, adj, compute_dtype=jnp.bfloat16))
    assert out_bf16.shape == ref.shape
    assert jnp.allclose(out_bf16, ref, rtol=0.0, atol=6e-2), "bf16 mismatch vs reference"

    print("KERNEL_OK")
</pallas_src>

<mosaic_0001>
module attributes {stable_mosaic.version = 11 : i64} {
  func.func @_stru_decoder_kernel(%arg0: i32, %arg1: memref<2x128x32xf32, #tpu.memory_space<vmem>>, %arg2: memref<2x128x128xf32, #tpu.memory_space<vmem>>) attributes {dimension_semantics = [#tpu.dimension_semantics<parallel>], iteration_bounds = array<i64: 2>, scalar_prefetch = 0 : i64, scratch_operands = 0 : i64, tpu.core_type = #tpu.core_type<tc>, window_params = [{transform_indices = @transform_0, window_bounds = array<i64: 2, 128, 32>}, {transform_indices = @transform_1, window_bounds = array<i64: 2, 128, 128>}]} {
    %c0 = arith.constant 0 : index
    %c0_0 = arith.constant 0 : index
    %c0_1 = arith.constant 0 : index
    %0 = vector.load %arg1[%c0, %c0_0, %c0_1] : memref<2x128x32xf32, #tpu.memory_space<vmem>>, vector<2x128x32xf32>
    "tpu.trace_start"() <{level = 10 : i32, message = "bnd,bmd->bnm"}> : () -> ()
    %cst = arith.constant dense<0.000000e+00> : vector<2x128x128xf32>
    %1 = tpu.matmul %0, %0, %cst {dimension_numbers = #tpu.dot_dimension_numbers<[2], [2], [1], [1], [0, 0, 0, 1, 1, 1], [0], [0]>} : vector<2x128x32xf32>, vector<2x128x32xf32>, vector<2x128x128xf32> -> vector<2x128x128xf32>
    "tpu.trace_stop"() : () -> ()
    %2 = arith.negf %1 : vector<2x128x128xf32>
    %3 = math.exp %2 : vector<2x128x128xf32>
    %cst_2 = arith.constant 1.000000e+00 : f32
    %4 = vector.broadcast %cst_2 : f32 to vector<2x128x128xf32>
    %5 = arith.addf %4, %3 : vector<2x128x128xf32>
    %6 = arith.divf %4, %5 : vector<2x128x128xf32>
    %c0_3 = arith.constant 0 : index
    %c0_4 = arith.constant 0 : index
    %c0_5 = arith.constant 0 : index
    %7 = vector.load %arg2[%c0_3, %c0_4, %c0_5] : memref<2x128x128xf32, #tpu.memory_space<vmem>>, vector<2x128x128xf32>
    tpu.vector_store %arg2[%c0_3, %c0_4, %c0_5], %6 {strides = array<i32>} : memref<2x128x128xf32, #tpu.memory_space<vmem>>, vector<2x128x128xf32>,
    return
  }
  func.func @transform_0(%arg0: i32) -> (i32, i32, i32) {
    %c0_i32 = arith.constant 0 : i32
    %c0_i32_0 = arith.constant 0 : i32
    %c0_i32_1 = arith.constant 0 : i32
    return %arg0, %c0_i32, %c0_i32_0 : i32, i32, i32
  }
  func.func @transform_1(%arg0: i32) -> (i32, i32, i32) {
    %c0_i32 = arith.constant 0 : i32
    %c0_i32_0 = arith.constant 0 : i32
    %c0_i32_1 = arith.constant 0 : i32
    return %arg0, %c0_i32, %c0_i32_0 : i32, i32, i32
  }
}

</mosaic_0001>

<llo_original>
// kernel: tpu_custom_call.1
$region0: #{tpu_custom_call.1}
  #allocation0 [shape = 'u32[]', space=smem, size = 0x4, offset = 0x4, fixed_abs, tag = 'smem constant byte address 0x4 - core index']
  #allocation1 [shape = 'u32[144,128]{1,0:T(1,128)}', space=vmem, size = 0x12000, scoped, tag = 'internal scratch']
  %s0 = inlined_call_operand.vmem [shape: f32[4,128,32], index: 0, kind: input, shape index: {}]
  %s1 = inlined_call_operand.hbm [shape: f32[4,128,128], index: 1, kind: output, shape index: {}]
  %s2 = sld [smem:[#allocation0]]
  $region37: #{tpu_custom_call.1} parent=0
    _
  %s4 = ssub.s32 1, %s2
  %s5 = scalar_select 0, %s4, %s2
  $region1: #{tpu_custom_call.1} parent=0
    #allocation2 [shape = 'u8[262144]{0}', space=vmem, size = 0x40000, scoped, tag = 'output window, operand 0']
    #allocation3 [shape = 's32[2]{0}', space=sflag, size = 0x8, scoped, tag = 'scoped memory for tpu_custom_call.1']
    %6 = vsyncpa [#allocation3], 0
    %s7 = scalar_lea.sflag [#allocation3], 1
    %8 = vsyncpa %s7, 0
    loop: start=0, step=1, limit=4
    $region2: #{tpu_custom_call.1} parent=1 // loop_pre_header
      _
    $region3: #{tpu_custom_call.1} parent=1 // loop_header
      %s10 = sphi 0, %s14
      %p11 = scmp.ge.s32.totalorder %s10, 4
      %s20 = sphi 0, %s22
      %s23 = sphi 0, %s20
      %s24 = sphi 0, %s23
      %s40 = sphi 0, %s24
      %s46 = sphi 0, %s48
      %s49 = sphi 0, %s46
      %s50 = sphi 0, %s49
      %s66 = sphi 0, %s50
    $region4: #{tpu_custom_call.1} parent=1 // loop_header_branch
      %13 = sbr.rel (%p11) target = $region8
    $region5: #{tpu_custom_call.1} parent=1 // loop_body
      %s15 = ssub.s32 %s10, 1
      %s16 = ssub.s32 %s10, 2
      %s17 = sadd.s32 %s10, 1
      %s18 = ssub.s32 %s10, %s17
      %p19 = scmp.eq.s32.totalorder %s18, 0
      %s21 = sadd.s32 %s20, 1
      %s22 = scalar_select %p19, %s20, %s21
      %p25 = pneg %p19
      %p26 = scmp.eq.s32.totalorder %s10, 1
      %p27 = por %p25, %p26
      %p28 = scmp.ne.s32.totalorder %s20, %s23
      %p29 = scmp.eq.s32.totalorder %s10, 0
      %p30 = por %p28, %p29
      %p31 = scmp.ne.s32.totalorder %s20, %s23
      %p32 = scmp.eq.s32.totalorder %s15, 1
      %p33 = por %p31, %p32
      %p34 = scmp.ne.s32.totalorder %s23, %s24
      %p35 = scmp.eq.s32.totalorder %s15, 0
      %p36 = por %p34, %p35
      %p37 = scmp.ne.s32.totalorder %s23, %s24
      %p38 = scmp.eq.s32.totalorder %s16, 1
      %p39 = por %p37, %p38
      %p41 = scmp.ne.s32.totalorder %s24, %s40
      %p42 = scmp.eq.s32.totalorder %s16, 0
      %p43 = por %p41, %p42
      %s44 = ssub.s32 %s10, %s17
      %p45 = scmp.eq.s32.totalorder %s44, 0
      %s47 = sadd.s32 %s46, 1
      %s48 = scalar_select %p45, %s46, %s47
      %p51 = pneg %p45
      %p52 = scmp.eq.s32.totalorder %s10, 1
      %p53 = por %p51, %p52
      %p54 = scmp.ne.s32.totalorder %s46, %s49
      %p55 = scmp.eq.s32.totalorder %s10, 0
      %p56 = por %p54, %p55
      %p57 = scmp.ne.s32.totalorder %s46, %s49
      %p58 = scmp.eq.s32.totalorder %s15, 1
      %p59 = por %p57, %p58
      %p60 = scmp.ne.s32.totalorder %s49, %s50
      %p61 = scmp.eq.s32.totalorder %s15, 0
      %p62 = por %p60, %p61
      %p63 = scmp.ne.s32.totalorder %s49, %s50
      %p64 = scmp.eq.s32.totalorder %s16, 1
      %p65 = por %p63, %p64
      %p67 = scmp.ne.s32.totalorder %s50, %s66
      %p68 = scmp.eq.s32.totalorder %s16, 0
      %p69 = por %p67, %p68
      %p70 = scmp.le.s32.totalorder 1, %s10
      %p71 = scmp.lt.s32.totalorder %s10, 3
      %p72 = pnand %p70, %p71
      %p73 = pneg %p72
      // Predicated region
      $region9: #{tpu_custom_call.1} parent=5 // pred_check
        _
      $region10: #{tpu_custom_call.1} parent=5 // pred_check_branch
        %75 = sbr.rel (%p72) target = $region12
      $region11: #{tpu_custom_call.1} parent=5 // pred_region
        %s76 = ssub.s32 %s10, 1
      $region12: #{tpu_custom_call.1} parent=5 // pred_fallthru
        _
      %p77 = scmp.lt.s32.totalorder %s10, 2
      // Predicated region
      $region13: #{tpu_custom_call.1} parent=5 // pred_check
        %p78 = pneg %p77
      $region14: #{tpu_custom_call.1} parent=5 // pred_check_branch
        %80 = sbr.rel (%p78) target = $region16
      $region15: #{tpu_custom_call.1} parent=5 // pred_region
        // Predicated region
        $region17: #{tpu_custom_call.1} parent=15 // pred_check
          %p81 = pneg %p30
        $region18: #{tpu_custom_call.1} parent=15 // pred_check_branch
          %83 = sbr.rel (%p81) target = $region20
        $region19: #{tpu_custom_call.1} parent=15 // pred_region
          %s84 = smul.u32 2, %s10
          %p85 = scmp.lt.s32.totalorder %s84, 3
          %s86 = scalar_select %p85, %s84, 3
          %s87 = smul.addr %s86, 16
          %s88 = smul.addr %s87, 8
          %s89 = scalar_lea.vmem %s0, %s88
          %s90 = smul.u32 2, %s10
        $region20: #{tpu_custom_call.1} parent=15 // pred_fallthru
          _
      $region16: #{tpu_custom_call.1} parent=5 // pred_fallthru
        _
      %p91 = scmp.le.s32.totalorder 1, %s10
      %p92 = scmp.lt.s32.totalorder %s10, 3
      %p93 = pnand %p91, %p92
      %p94 = pneg %p93
      // Predicated region
      $region21: #{tpu_custom_call.1} parent=5 // pred_check
        _
      $region22: #{tpu_custom_call.1} parent=5 // pred_check_branch
        %96 = sbr.rel (%p93) target = $region24
      $region23: #{tpu_custom_call.1} parent=5 // pred_region
        %s97 = ssub.s32 %s10, 1
        %s98 = smul.u32 2, %s15
        %p99 = scmp.lt.s32.totalorder %s98, 3
        %s100 = scalar_select %p99, %s98, 3
        %s101 = smul.addr %s100, 16
        %s102 = smul.addr %s101, 8
        %s103 = scalar_lea.vmem %s0, %s102
        %p104 = pneg %p36
        %p105 = pneg %p33
        %p106 = pneg %p62
        %p107 = pneg %p59
        %s108 = sand.u32 %s49, 1
        %s109 = scalar_lea.sflag [#allocation3], %s108
        %s110 = sand.u32 %s49, 1
        %s111 = smul.addr %s110, 256
        %s112 = scalar_lea.vmem [#allocation2], %s111
        %s113 = smul.u32 2, %s15
        %p114 = scmp.lt.s32.totalorder %s113, 3
        %s115 = scalar_select %p114, %s113, 3
        %s116 = smul.addr %s115, 16
        %s117 = smul.addr %s116, 8
        %s118 = scalar_lea.vmem %s0, %s117
        %s119 = smul.u32 2, %s15
        %s120 = smul.u32 2, %s15
        %v121 = vld [vmem:[%s118] sm:$0xff]
        %v122 = vld [vmem:[%s118 + $0x8] sm:$0xff]
        %v123 = vld [vmem:[%s118 + $0x10] sm:$0xff]
        %v124 = vld [vmem:[%s118 + $0x18] sm:$0xff]
        %v125 = vld [vmem:[%s118 + $0x20] sm:$0xff]
        %v126 = vld [vmem:[%s118 + $0x28] sm:$0xff]
        %v127 = vld [vmem:[%s118 + $0x30] sm:$0xff]
        %v128 = vld [vmem:[%s118 + $0x38] sm:$0xff]
        %v129 = vld [vmem:[%s118 + $0x40] sm:$0xff]
        %v130 = vld [vmem:[%s118 + $0x48] sm:$0xff]
        %v131 = vld [vmem:[%s118 + $0x50] sm:$0xff]
        %v132 = vld [vmem:[%s118 + $0x58] sm:$0xff]
        %v133 = vld [vmem:[%s118 + $0x60] sm:$0xff]
        %v134 = vld [vmem:[%s118 + $0x68] sm:$0xff]
        %v135 = vld [vmem:[%s118 + $0x70] sm:$0xff]
        %v136 = vld [vmem:[%s118 + $0x78] sm:$0xff]
        %v137 = vld [vmem:[%s118 + $0x80] sm:$0xff]
        %v138 = vld [vmem:[%s118 + $0x88] sm:$0xff]
        %v139 = vld [vmem:[%s118 + $0x90] sm:$0xff]
        %v140 = vld [vmem:[%s118 + $0x98] sm:$0xff]
        %v141 = vld [vmem:[%s118 + $0xa0] sm:$0xff]
        %v142 = vld [vmem:[%s118 + $0xa8] sm:$0xff]
        %v143 = vld [vmem:[%s118 + $0xb0] sm:$0xff]
        %v144 = vld [vmem:[%s118 + $0xb8] sm:$0xff]
        %v145 = vld [vmem:[%s118 + $0xc0] sm:$0xff]
        %v146 = vld [vmem:[%s118 + $0xc8] sm:$0xff]
        %v147 = vld [vmem:[%s118 + $0xd0] sm:$0xff]
        %v148 = vld [vmem:[%s118 + $0xd8] sm:$0xff]
        %v149 = vld [vmem:[%s118 + $0xe0] sm:$0xff]
        %v150 = vld [vmem:[%s118 + $0xe8] sm:$0xff]
        %v151 = vld [vmem:[%s118 + $0xf0] sm:$0xff]
        %v152 = vld [vmem:[%s118 + $0xf8] sm:$0xff]
        %vm153 = vcmask 261120
        %v155 = vsel %vm153, %v121, 0
        %v158 = vsel %vm153, %v122, 0
        %v161 = vsel %vm153, %v123, 0
        %v164 = vsel %vm153, %v124, 0
        %v167 = vsel %vm153, %v125, 0
        %v170 = vsel %vm153, %v126, 0
        %v173 = vsel %vm153, %v127, 0
        %v176 = vsel %vm153, %v128, 0
        %v179 = vsel %vm153, %v129, 0
        %v182 = vsel %vm153, %v130, 0
        %v185 = vsel %vm153, %v131, 0
        %v188 = vsel %vm153, %v132, 0
        %v191 = vsel %vm153, %v133, 0
        %v194 = vsel %vm153, %v134, 0
        %v197 = vsel %vm153, %v135, 0
        %v200 = vsel %vm153, %v136, 0
        %202 = vmatprep.subr.mxu0 0.0
        %203 = vmatpush1.xpose.msra.mxu0 %v200
        %204 = vmatprep.subr.mxu0 0.0
        %205 = vmatpush1.xpose.msra.mxu0 %v197
        %206 = vmatprep.subr.mxu0 0.0
        %207 = vmatpush1.xpose.msra.mxu0 %v194
        %208 = vmatprep.subr.mxu0 0.0
        %209 = vmatpush1.xpose.msra.mxu0 %v191
        %210 = vmatprep.subr.mxu0 0.0
        %211 = vmatpush1.xpose.msra.mxu0 %v188
        %212 = vmatprep.subr.mxu0 0.0
        %213 = vmatpush1.xpose.msra.mxu0 %v185
        %214 = vmatprep.subr.mxu0 0.0
        %215 = vmatpush1.xpose.msra.mxu0 %v182
        %216 = vmatprep.subr.mxu0 0.0
        %217 = vmatpush1.xpose.msra.mxu0 %v179
        %218 = vmatprep.subr.mxu0 0.0
        %219 = vmatpush1.xpose.msra.mxu0 %v176
        %220 = vmatprep.subr.mxu0 0.0
        %221 = vmatpush1.xpose.msra.mxu0 %v173
        %222 = vmatprep.subr.mxu0 0.0
        %223 = vmatpush1.xpose.msra.mxu0 %v170
        %224 = vmatprep.subr.mxu0 0.0
        %225 = vmatpush1.xpose.msra.mxu0 %v167
        %226 = vmatprep.subr.mxu0 0.0
        %227 = vmatpush1.xpose.msra.mxu0 %v164
        %228 = vmatprep.subr.mxu0 0.0
        %229 = vmatpush1.xpose.msra.mxu0 %v161
        %230 = vmatprep.subr.mxu0 0.0
        %231 = vmatpush1.xpose.msra.mxu0 %v158
        %232 = vmatprep.subr.mxu0 0.0
        %233 = vmatpush1.xpose.msra.mxu0 %v155
        %234 = vmatprep.subr.mxu0 0.0
        %235 = vmatpush2.xpose.msra.mxu0 0.0
        %236 = vmatprep.subr.mxu0 0.0
        %237 = vmatpush2.xpose.msra.mxu0 0.0
        %238 = vmatprep.subr.mxu0 0.0
        %239 = vmatpush2.xpose.msra.mxu0 0.0
        %240 = vmatprep.subr.mxu0 0.0
        %241 = vmatpush2.xpose.msra.mxu0 0.0
        %242 = vmatprep.subr.mxu0 0.0
        %243 = vmatpush2.xpose.msra.mxu0 0.0
        %244 = vmatprep.subr.mxu0 0.0
        %245 = vmatpush2.xpose.msra.mxu0 0.0
        %246 = vmatprep.subr.mxu0 0.0
        %247 = vmatpush2.xpose.msra.mxu0 0.0
        %248 = vmatprep.subr.mxu0 0.0
        %249 = vmatpush2.xpose.msra.mxu0 0.0
        %250 = vmatprep.subr.mxu0 0.0
        %251 = vmatpush2.xpose.msra.mxu0 0.0
        %252 = vmatprep.subr.mxu0 0.0
        %253 = vmatpush2.xpose.msra.mxu0 0.0
        %254 = vmatprep.subr.mxu0 0.0
        %255 = vmatpush2.xpose.msra.mxu0 0.0
        %256 = vmatprep.subr.mxu0 0.0
        %257 = vmatpush2.xpose.msra.mxu0 0.0
        %258 = vmatprep.subr.mxu0 0.0
        %259 = vmatpush2.xpose.msra.mxu0 0.0
        %260 = vmatprep.subr.mxu0 0.0
        %261 = vmatpush2.xpose.msra.mxu0 0.0
        %262 = vmatprep.subr.mxu0 0.0
        %263 = vmatpush2.xpose.msra.mxu0 0.0
        %264 = vmatprep.subr.mxu0 0.0
        %265 = vmatpush2.xpose.msra.mxu0 0.0
        %266 = vmatprep.mubr.f32.mxu0 0.0
        %267 = vmatmul.mubr.f32.gmra.mxu0 %v155
        %v268 = vpop.f32.mrf.mxu0
        %v269 = vadd.f32 0.0, %v268
        %v270 = vpop.f32.mrf.mxu0
        %271 = vmatprep.mubr.f32.mxu0 0.0
        %272 = vmatmul.mubr.f32.gmra.mxu0 %v158
        %v273 = vpop.f32.mrf.mxu0
        %v274 = vadd.f32 0.0, %v273
        %v275 = vpop.f32.mrf.mxu0
        %276 = vmatprep.mubr.f32.mxu0 0.0
        %277 = vmatmul.mubr.f32.gmra.mxu0 %v161
        %v278 = vpop.f32.mrf.mxu0
        %v279 = vadd.f32 0.0, %v278
        %v280 = vpop.f32.mrf.mxu0
        %281 = vmatprep.mubr.f32.mxu0 0.0
        %282 = vmatmul.mubr.f32.gmra.mxu0 %v164
        %v283 = vpop.f32.mrf.mxu0
        %v284 = vadd.f32 0.0, %v283
        %v285 = vpop.f32.mrf.mxu0
        %286 = vmatprep.mubr.f32.mxu0 0.0
        %287 = vmatmul.mubr.f32.gmra.mxu0 %v167
        %v288 = vpop.f32.mrf.mxu0
        %v289 = vadd.f32 0.0, %v288
        %v290 = vpop.f32.mrf.mxu0
        %291 = vmatprep.mubr.f32.mxu0 0.0
        %292 = vmatmul.mubr.f32.gmra.mxu0 %v170
        %v293 = vpop.f32.mrf.mxu0
        %v294 = vadd.f32 0.0, %v293
        %v295 = vpop.f32.mrf.mxu0
        %296 = vmatprep.mubr.f32.mxu0 0.0
        %297 = vmatmul.mubr.f32.gmra.mxu0 %v173
        %v298 = vpop.f32.mrf.mxu0
        %v299 = vadd.f32 0.0, %v298
        %v300 = vpop.f32.mrf.mxu0
        %301 = vmatprep.mubr.f32.mxu0 0.0
        %302 = vmatmul.mubr.f32.gmra.mxu0 %v176
        %v303 = vpop.f32.mrf.mxu0
        %v304 = vadd.f32 0.0, %v303
        %v305 = vpop.f32.mrf.mxu0
        %306 = vmatprep.mubr.f32.mxu0 0.0
        %307 = vmatmul.mubr.f32.gmra.mxu0 %v179
        %v308 = vpop.f32.mrf.mxu0
        %v309 = vadd.f32 0.0, %v308
        %v310 = vpop.f32.mrf.mxu0
        %311 = vmatprep.mubr.f32.mxu0 0.0
        %312 = vmatmul.mubr.f32.gmra.mxu0 %v182
        %v313 = vpop.f32.mrf.mxu0
        %v314 = vadd.f32 0.0, %v313
        %v315 = vpop.f32.mrf.mxu0
        %316 = vmatprep.mubr.f32.mxu0 0.0
        %317 = vmatmul.mubr.f32.gmra.mxu0 %v185
        %v318 = vpop.f32.mrf.mxu0
        %v319 = vadd.f32 0.0, %v318
        %v320 = vpop.f32.mrf.mxu0
        %321 = vmatprep.mubr.f32.mxu0 0.0
        %322 = vmatmul.mubr.f32.gmra.mxu0 %v188
        %v323 = vpop.f32.mrf.mxu0
        %v324 = vadd.f32 0.0, %v323
        %v325 = vpop.f32.mrf.mxu0
        %326 = vmatprep.mubr.f32.mxu0 0.0
        %327 = vmatmul.mubr.f32.gmra.mxu0 %v191
        %v328 = vpop.f32.mrf.mxu0
        %v329 = vadd.f32 0.0, %v328
        %v330 = vpop.f32.mrf.mxu0
        %331 = vmatprep.mubr.f32.mxu0 0.0
        %332 = vmatmul.mubr.f32.gmra.mxu0 %v194
        %v333 = vpop.f32.mrf.mxu0
        %v334 = vadd.f32 0.0, %v333
        %v335 = vpop.f32.mrf.mxu0
        %336 = vmatprep.mubr.f32.mxu0 0.0
        %337 = vmatmul.mubr.f32.gmra.mxu0 %v197
        %v338 = vpop.f32.mrf.mxu0
        %v339 = vadd.f32 0.0, %v338
        %v340 = vpop.f32.mrf.mxu0
        %341 = vmatprep.mubr.f32.mxu0 0.0
        %342 = vmatmul.mubr.f32.gmra.mxu0 %v200
        %v343 = vpop.f32.mrf.mxu0
        %v344 = vadd.f32 0.0, %v343
        %v345 = vpop.f32.mrf.mxu0
        %346 = vdwg.mxu0
        %v348 = vsel %vm153, %v137, 0
        %v351 = vsel %vm153, %v138, 0
        %v354 = vsel %vm153, %v139, 0
        %v357 = vsel %vm153, %v140, 0
        %v360 = vsel %vm153, %v141, 0
        %v363 = vsel %vm153, %v142, 0
        %v366 = vsel %vm153, %v143, 0
        %v369 = vsel %vm153, %v144, 0
        %v372 = vsel %vm153, %v145, 0
        %v375 = vsel %vm153, %v146, 0
        %v378 = vsel %vm153, %v147, 0
        %v381 = vsel %vm153, %v148, 0
        %v384 = vsel %vm153, %v149, 0
        %v387 = vsel %vm153, %v150, 0
        %v390 = vsel %vm153, %v151, 0
        %v393 = vsel %vm153, %v152, 0
        %395 = vmatprep.subr.mxu0 0.0
        %396 = vmatpush1.xpose.msra.mxu0 %v393
        %397 = vmatprep.subr.mxu0 0.0
        %398 = vmatpush1.xpose.msra.mxu0 %v390
        %399 = vmatprep.subr.mxu0 0.0
        %400 = vmatpush1.xpose.msra.mxu0 %v387
        %401 = vmatprep.subr.mxu0 0.0
        %402 = vmatpush1.xpose.msra.mxu0 %v384
        %403 = vmatprep.subr.mxu0 0.0
        %404 = vmatpush1.xpose.msra.mxu0 %v381
        %405 = vmatprep.subr.mxu0 0.0
        %406 = vmatpush1.xpose.msra.mxu0 %v378
        %407 = vmatprep.subr.mxu0 0.0
        %408 = vmatpush1.xpose.msra.mxu0 %v375
        %409 = vmatprep.subr.mxu0 0.0
        %410 = vmatpush1.xpose.msra.mxu0 %v372
        %411 = vmatprep.subr.mxu0 0.0
        %412 = vmatpush1.xpose.msra.mxu0 %v369
        %413 = vmatprep.subr.mxu0 0.0
        %414 = vmatpush1.xpose.msra.mxu0 %v366
        %415 = vmatprep.subr.mxu0 0.0
        %416 = vmatpush1.xpose.msra.mxu0 %v363
        %417 = vmatprep.subr.mxu0 0.0
        %418 = vmatpush1.xpose.msra.mxu0 %v360
        %419 = vmatprep.subr.mxu0 0.0
        %420 = vmatpush1.xpose.msra.mxu0 %v357
        %421 = vmatprep.subr.mxu0 0.0
        %422 = vmatpush1.xpose.msra.mxu0 %v354
        %423 = vmatprep.subr.mxu0 0.0
        %424 = vmatpush1.xpose.msra.mxu0 %v351
        %425 = vmatprep.subr.mxu0 0.0
        %426 = vmatpush1.xpose.msra.mxu0 %v348
        %427 = vmatprep.subr.mxu0 0.0
        %428 = vmatpush2.xpose.msra.mxu0 0.0
        %429 = vmatprep.subr.mxu0 0.0
        %430 = vmatpush2.xpose.msra.mxu0 0.0
        %431 = vmatprep.subr.mxu0 0.0
        %432 = vmatpush2.xpose.msra.mxu0 0.0
        %433 = vmatprep.subr.mxu0 0.0
        %434 = vmatpush2.xpose.msra.mxu0 0.0
        %435 = vmatprep.subr.mxu0 0.0
        %436 = vmatpush2.xpose.msra.mxu0 0.0
        %437 = vmatprep.subr.mxu0 0.0
        %438 = vmatpush2.xpose.msra.mxu0 0.0
        %439 = vmatprep.subr.mxu0 0.0
        %440 = vmatpush2.xpose.msra.mxu0 0.0
        %441 = vmatprep.subr.mxu0 0.0
        %442 = vmatpush2.xpose.msra.mxu0 0.0
        %443 = vmatprep.subr.mxu0 0.0
        %444 = vmatpush2.xpose.msra.mxu0 0.0
        %445 = vmatprep.subr.mxu0 0.0
        %446 = vmatpush2.xpose.msra.mxu0 0.0
        %447 = vmatprep.subr.mxu0 0.0
        %448 = vmatpush2.xpose.msra.mxu0 0.0
        %449 = vmatprep.subr.mxu0 0.0
        %450 = vmatpush2.xpose.msra.mxu0 0.0
        %451 = vmatprep.subr.mxu0 0.0
        %452 = vmatpush2.xpose.msra.mxu0 0.0
        %453 = vmatprep.subr.mxu0 0.0
        %454 = vmatpush2.xpose.msra.mxu0 0.0
        %455 = vmatprep.subr.mxu0 0.0
        %456 = vmatpush2.xpose.msra.mxu0 0.0
        %457 = vmatprep.subr.mxu0 0.0
        %458 = vmatpush2.xpose.msra.mxu0 0.0
        %459 = vmatprep.mubr.f32.mxu0 0.0
        %460 = vmatmul.mubr.f32.gmra.mxu0 %v348
        %v461 = vpop.f32.mrf.mxu0
        %v462 = vadd.f32 0.0, %v461
        %v463 = vpop.f32.mrf.mxu0
        %464 = vmatprep.mubr.f32.mxu0 0.0
        %465 = vmatmul.mubr.f32.gmra.mxu0 %v351
        %v466 = vpop.f32.mrf.mxu0
        %v467 = vadd.f32 0.0, %v466
        %v468 = vpop.f32.mrf.mxu0
        %469 = vmatprep.mubr.f32.mxu0 0.0
        %470 = vmatmul.mubr.f32.gmra.mxu0 %v354
        %v471 = vpop.f32.mrf.mxu0
        %v472 = vadd.f32 0.0, %v471
        %v473 = vpop.f32.mrf.mxu0
        %474 = vmatprep.mubr.f32.mxu0 0.0
        %475 = vmatmul.mubr.f32.gmra.mxu0 %v357
        %v476 = vpop.f32.mrf.mxu0
        %v477 = vadd.f32 0.0, %v476
        %v478 = vpop.f32.mrf.mxu0
        %479 = vmatprep.mubr.f32.mxu0 0.0
        %480 = vmatmul.mubr.f32.gmra.mxu0 %v360
        %v481 = vpop.f32.mrf.mxu0
        %v482 = vadd.f32 0.0, %v481
        %v483 = vpop.f32.mrf.mxu0
        %484 = vmatprep.mubr.f32.mxu0 0.0
        %485 = vmatmul.mubr.f32.gmra.mxu0 %v363
        %v486 = vpop.f32.mrf.mxu0
        %v487 = vadd.f32 0.0, %v486
        %v488 = vpop.f32.mrf.mxu0
        %489 = vmatprep.mubr.f32.mxu0 0.0
        %490 = vmatmul.mubr.f32.gmra.mxu0 %v366
        %v491 = vpop.f32.mrf.mxu0
        %v492 = vadd.f32 0.0, %v491
        %v493 = vpop.f32.mrf.mxu0
        %494 = vmatprep.mubr.f32.mxu0 0.0
        %495 = vmatmul.mubr.f32.gmra.mxu0 %v369
        %v496 = vpop.f32.mrf.mxu0
        %v497 = vadd.f32 0.0, %v496
        %v498 = vpop.f32.mrf.mxu0
        %499 = vmatprep.mubr.f32.mxu0 0.0
        %500 = vmatmul.mubr.f32.gmra.mxu0 %v372
        %v501 = vpop.f32.mrf.mxu0
        %v502 = vadd.f32 0.0, %v501
        %v503 = vpop.f32.mrf.mxu0
        %504 = vmatprep.mubr.f32.mxu0 0.0
        %505 = vmatmul.mubr.f32.gmra.mxu0 %v375
        %v506 = vpop.f32.mrf.mxu0
        %v507 = vadd.f32 0.0, %v506
        %v508 = vpop.f32.mrf.mxu0
        %509 = vmatprep.mubr.f32.mxu0 0.0
        %510 = vmatmul.mubr.f32.gmra.mxu0 %v378
        %v511 = vpop.f32.mrf.mxu0
        %v512 = vadd.f32 0.0, %v511
        %v513 = vpop.f32.mrf.mxu0
        %514 = vmatprep.mubr.f32.mxu0 0.0
        %515 = vmatmul.mubr.f32.gmra.mxu0 %v381
        %v516 = vpop.f32.mrf.mxu0
        %v517 = vadd.f32 0.0, %v516
        %v518 = vpop.f32.mrf.mxu0
        %519 = vmatprep.mubr.f32.mxu0 0.0
        %520 = vmatmul.mubr.f32.gmra.mxu0 %v384
        %v521 = vpop.f32.mrf.mxu0
        %v522 = vadd.f32 0.0, %v521
        %v523 = vpop.f32.mrf.mxu0
        %524 = vmatprep.mubr.f32.mxu0 0.0
        %525 = vmatmul.mubr.f32.gmra.mxu0 %v387
        %v526 = vpop.f32.mrf.mxu0
        %v527 = vadd.f32 0.0, %v526
        %v528 = vpop.f32.mrf.mxu0
        %529 = vmatprep.mubr.f32.mxu0 0.0
        %530 = vmatmul.mubr.f32.gmra.mxu0 %v390
        %v531 = vpop.f32.mrf.mxu0
        %v532 = vadd.f32 0.0, %v531
        %v533 = vpop.f32.mrf.mxu0
        %534 = vmatprep.mubr.f32.mxu0 0.0
        %535 = vmatmul.mubr.f32.gmra.mxu0 %v393
        %v536 = vpop.f32.mrf.mxu0
        %v537 = vadd.f32 0.0, %v536
        %v538 = vpop.f32.mrf.mxu0
        %539 = vdwg.mxu0
        %v540 = vxor.u32 %v269, 2147483648
        %v541 = vxor.u32 %v274, 2147483648
        %v542 = vxor.u32 %v279, 2147483648
        %v543 = vxor.u32 %v284, 2147483648
        %v544 = vxor.u32 %v289, 2147483648
        %v545 = vxor.u32 %v294, 2147483648
        %v546 = vxor.u32 %v299, 2147483648
        %v547 = vxor.u32 %v304, 2147483648
        %v548 = vxor.u32 %v309, 2147483648
        %v549 = vxor.u32 %v314, 2147483648
        %v550 = vxor.u32 %v319, 2147483648
        %v551 = vxor.u32 %v324, 2147483648
        %v552 = vxor.u32 %v329, 2147483648
        %v553 = vxor.u32 %v334, 2147483648
        %v554 = vxor.u32 %v339, 2147483648
        %v555 = vxor.u32 %v344, 2147483648
        %v556 = vxor.u32 %v462, 2147483648
        %v557 = vxor.u32 %v467, 2147483648
        %v558 = vxor.u32 %v472, 2147483648
        %v559 = vxor.u32 %v477, 2147483648
        %v560 = vxor.u32 %v482, 2147483648
        %v561 = vxor.u32 %v487, 2147483648
        %v562 = vxor.u32 %v492, 2147483648
        %v563 = vxor.u32 %v497, 2147483648
        %v564 = vxor.u32 %v502, 2147483648
        %v565 = vxor.u32 %v507, 2147483648
        %v566 = vxor.u32 %v512, 2147483648
        %v567 = vxor.u32 %v517, 2147483648
        %v568 = vxor.u32 %v522, 2147483648
        %v569 = vxor.u32 %v527, 2147483648
        %v570 = vxor.u32 %v532, 2147483648
        %v571 = vxor.u32 %v537, 2147483648
        %v572 = vmul.f32 %v540, 1.442695
        %v573 = vpow.pop %v572
        %v574 = vmul.f32 %v541, 1.442695
        %v575 = vpow.pop %v574
        %v576 = vmul.f32 %v542, 1.442695
        %v577 = vpow.pop %v576
        %v578 = vmul.f32 %v543, 1.442695
        %v579 = vpow.pop %v578
        %v580 = vmul.f32 %v544, 1.442695
        %v581 = vpow.pop %v580
        %v582 = vmul.f32 %v545, 1.442695
        %v583 = vpow.pop %v582
        %v584 = vmul.f32 %v546, 1.442695
        %v585 = vpow.pop %v584
        %v586 = vmul.f32 %v547, 1.442695
        %v587 = vpow.pop %v586
        %v588 = vmul.f32 %v548, 1.442695
        %v589 = vpow.pop %v588
        %v590 = vmul.f32 %v549, 1.442695
        %v591 = vpow.pop %v590
        %v592 = vmul.f32 %v550, 1.442695
        %v593 = vpow.pop %v592
        %v594 = vmul.f32 %v551, 1.442695
        %v595 = vpow.pop %v594
        %v596 = vmul.f32 %v552, 1.442695
        %v597 = vpow.pop %v596
        %v598 = vmul.f32 %v553, 1.442695
        %v599 = vpow.pop %v598
        %v600 = vmul.f32 %v554, 1.442695
        %v601 = vpow.pop %v600
        %v602 = vmul.f32 %v555, 1.442695
        %v603 = vpow.pop %v602
        %v604 = vmul.f32 %v556, 1.442695
        %v605 = vpow.pop %v604
        %v606 = vmul.f32 %v557, 1.442695
        %v607 = vpow.pop %v606
        %v608 = vmul.f32 %v558, 1.442695
        %v609 = vpow.pop %v608
        %v610 = vmul.f32 %v559, 1.442695
        %v611 = vpow.pop %v610
        %v612 = vmul.f32 %v560, 1.442695
        %v613 = vpow.pop %v612
        %v614 = vmul.f32 %v561, 1.442695
        %v615 = vpow.pop %v614
        %v616 = vmul.f32 %v562, 1.442695
        %v617 = vpow.pop %v616
        %v618 = vmul.f32 %v563, 1.442695
        %v619 = vpow.pop %v618
        %v620 = vmul.f32 %v564, 1.442695
        %v621 = vpow.pop %v620
        %v622 = vmul.f32 %v565, 1.442695
        %v623 = vpow.pop %v622
        %v624 = vmul.f32 %v566, 1.442695
        %v625 = vpow.pop %v624
        %v626 = vmul.f32 %v567, 1.442695
        %v627 = vpow.pop %v626
        %v628 = vmul.f32 %v568, 1.442695
        %v629 = vpow.pop %v628
        %v630 = vmul.f32 %v569, 1.442695
        %v631 = vpow.pop %v630
        %v632 = vmul.f32 %v570, 1.442695
        %v633 = vpow.pop %v632
        %v634 = vmul.f32 %v571, 1.442695
        %v635 = vpow.pop %v634
        %v636 = vadd.f32 %v573, 1.0
        %v637 = vadd.f32 %v575, 1.0
        %v638 = vadd.f32 %v577, 1.0
        %v639 = vadd.f32 %v579, 1.0
        %v640 = vadd.f32 %v581, 1.0
        %v641 = vadd.f32 %v583, 1.0
        %v642 = vadd.f32 %v585, 1.0
        %v643 = vadd.f32 %v587, 1.0
        %v644 = vadd.f32 %v589, 1.0
        %v645 = vadd.f32 %v591, 1.0
        %v646 = vadd.f32 %v593, 1.0
        %v647 = vadd.f32 %v595, 1.0
        %v648 = vadd.f32 %v597, 1.0
        %v649 = vadd.f32 %v599, 1.0
        %v650 = vadd.f32 %v601, 1.0
        %v651 = vadd.f32 %v603, 1.0
        %v652 = vadd.f32 %v605, 1.0
        %v653 = vadd.f32 %v607, 1.0
        %v654 = vadd.f32 %v609, 1.0
        %v655 = vadd.f32 %v611, 1.0
        %v656 = vadd.f32 %v613, 1.0
        %v657 = vadd.f32 %v615, 1.0
        %v658 = vadd.f32 %v617, 1.0
        %v659 = vadd.f32 %v619, 1.0
        %v660 = vadd.f32 %v621, 1.0
        %v661 = vadd.f32 %v623, 1.0
        %v662 = vadd.f32 %v625, 1.0
        %v663 = vadd.f32 %v627, 1.0
        %v664 = vadd.f32 %v629, 1.0
        %v665 = vadd.f32 %v631, 1.0
        %v666 = vadd.f32 %v633, 1.0
        %v667 = vadd.f32 %v635, 1.0
        %v668 = vrcp.pop %v636
        %v669 = vmul.f32 1.0, %v668
        %v670 = vrcp.pop %v637
        %v671 = vmul.f32 1.0, %v670
        %v672 = vrcp.pop %v638
        %v673 = vmul.f32 1.0, %v672
        %v674 = vrcp.pop %v639
        %v675 = vmul.f32 1.0, %v674
        %v676 = vrcp.pop %v640
        %v677 = vmul.f32 1.0, %v676
        %v678 = vrcp.pop %v641
        %v679 = vmul.f32 1.0, %v678
        %v680 = vrcp.pop %v642
        %v681 = vmul.f32 1.0, %v680
        %v682 = vrcp.pop %v643
        %v683 = vmul.f32 1.0, %v682
        %v684 = vrcp.pop %v644
        %v685 = vmul.f32 1.0, %v684
        %v686 = vrcp.pop %v645
        %v687 = vmul.f32 1.0, %v686
        %v688 = vrcp.pop %v646
        %v689 = vmul.f32 1.0, %v688
        %v690 = vrcp.pop %v647
        %v691 = vmul.f32 1.0, %v690
        %v692 = vrcp.pop %v648
        %v693 = vmul.f32 1.0, %v692
        %v694 = vrcp.pop %v649
        %v695 = vmul.f32 1.0, %v694
        %v696 = vrcp.pop %v650
        %v697 = vmul.f32 1.0, %v696
        %v698 = vrcp.pop %v651
        %v699 = vmul.f32 1.0, %v698
        %v700 = vrcp.pop %v652
        %v701 = vmul.f32 1.0, %v700
        %v702 = vrcp.pop %v653
        %v703 = vmul.f32 1.0, %v702
        %v704 = vrcp.pop %v654
        %v705 = vmul.f32 1.0, %v704
        %v706 = vrcp.pop %v655
        %v707 = vmul.f32 1.0, %v706
        %v708 = vrcp.pop %v656
        %v709 = vmul.f32 1.0, %v708
        %v710 = vrcp.pop %v657
        %v711 = vmul.f32 1.0, %v710
        %v712 = vrcp.pop %v658
        %v713 = vmul.f32 1.0, %v712
        %v714 = vrcp.pop %v659
        %v715 = vmul.f32 1.0, %v714
        %v716 = vrcp.pop %v660
        %v717 = vmul.f32 1.0, %v716
        %v718 = vrcp.pop %v661
        %v719 = vmul.f32 1.0, %v718
        %v720 = vrcp.pop %v662
        %v721 = vmul.f32 1.0, %v720
        %v722 = vrcp.pop %v663
        %v723 = vmul.f32 1.0, %v722
        %v724 = vrcp.pop %v664
        %v725 = vmul.f32 1.0, %v724
        %v726 = vrcp.pop %v665
        %v727 = vmul.f32 1.0, %v726
        %v728 = vrcp.pop %v666
        %v729 = vmul.f32 1.0, %v728
        %v730 = vrcp.pop %v667
        %v731 = vmul.f32 1.0, %v730
        %732 = vst [vmem:[%s112] sm:$0xff] %v669
        %733 = vst [vmem:[%s112 + $0x8] sm:$0xff] %v671
        %734 = vst [vmem:[%s112 + $0x10] sm:$0xff] %v673
        %735 = vst [vmem:[%s112 + $0x18] sm:$0xff] %v675
        %736 = vst [vmem:[%s112 + $0x20] sm:$0xff] %v677
        %737 = vst [vmem:[%s112 + $0x28] sm:$0xff] %v679
        %738 = vst [vmem:[%s112 + $0x30] sm:$0xff] %v681
        %739 = vst [vmem:[%s112 + $0x38] sm:$0xff] %v683
        %740 = vst [vmem:[%s112 + $0x40] sm:$0xff] %v685
        %741 = vst [vmem:[%s112 + $0x48] sm:$0xff] %v687
        %742 = vst [vmem:[%s112 + $0x50] sm:$0xff] %v689
        %743 = vst [vmem:[%s112 + $0x58] sm:$0xff] %v691
        %744 = vst [vmem:[%s112 + $0x60] sm:$0xff] %v693
        %745 = vst [vmem:[%s112 + $0x68] sm:$0xff] %v695
        %746 = vst [vmem:[%s112 + $0x70] sm:$0xff] %v697
        %747 = vst [vmem:[%s112 + $0x78] sm:$0xff] %v699
        %748 = vst [vmem:[%s112 + $0x80] sm:$0xff] %v701
        %749 = vst [vmem:[%s112 + $0x88] sm:$0xff] %v703
        %750 = vst [vmem:[%s112 + $0x90] sm:$0xff] %v705
        %751 = vst [vmem:[%s112 + $0x98] sm:$0xff] %v707
        %752 = vst [vmem:[%s112 + $0xa0] sm:$0xff] %v709
        %753 = vst [vmem:[%s112 + $0xa8] sm:$0xff] %v711
        %754 = vst [vmem:[%s112 + $0xb0] sm:$0xff] %v713
        %755 = vst [vmem:[%s112 + $0xb8] sm:$0xff] %v715
        %756 = vst [vmem:[%s112 + $0xc0] sm:$0xff] %v717
        %757 = vst [vmem:[%s112 + $0xc8] sm:$0xff] %v719
        %758 = vst [vmem:[%s112 + $0xd0] sm:$0xff] %v721
        %759 = vst [vmem:[%s112 + $0xd8] sm:$0xff] %v723
        %760 = vst [vmem:[%s112 + $0xe0] sm:$0xff] %v725
        %761 = vst [vmem:[%s112 + $0xe8] sm:$0xff] %v727
        %762 = vst [vmem:[%s112 + $0xf0] sm:$0xff] %v729
        %763 = vst [vmem:[%s112 + $0xf8] sm:$0xff] %v731
        %s764 = sand.u32 %s49, 1
        %s765 = scalar_lea.sflag [#allocation3], %s764
        %s766 = sand.u32 %s49, 1
        %s767 = smul.addr %s766, 256
        %s768 = scalar_lea.vmem [#allocation2], %s767
        // Predicated region
        $region25: #{tpu_custom_call.1} parent=23 // pred_check
          %p769 = pneg %p59
        $region26: #{tpu_custom_call.1} parent=23 // pred_check_branch
          %771 = sbr.rel (%p769) target = $region28
        $region27: #{tpu_custom_call.1} parent=23 // pred_region
          %s772 = smul.u32 2, %s15
          %s774 = ssub.s32 4096, 4096
          %775 = vsyncadd %s765, %s774
          %s776 = smul.addr %s772, 16
          %s777 = smul.addr %s776, 128
          %s778 = scalar_lea.hbm %s1, %s777
          %s779 = sshll.u32 %s768, 4
          %s780 = int_to_ptr.vmem [resolvable:$true] %s779
          %785 = dma.vmem_to_hbm [thread:$0]  %s780, 4096, %s778, %s765, 128, 128, 8
        $region28: #{tpu_custom_call.1} parent=23 // pred_fallthru
          _
      $region24: #{tpu_custom_call.1} parent=5 // pred_fallthru
        _
      %p786 = scmp.le.s32.totalorder 2, %s10
      // Predicated region
      $region29: #{tpu_custom_call.1} parent=5 // pred_check
        %p787 = pneg %p786
      $region30: #{tpu_custom_call.1} parent=5 // pred_check_branch
        %789 = sbr.rel (%p787) target = $region32
      $region31: #{tpu_custom_call.1} parent=5 // pred_region
        %s790 = ssub.s32 %s10, 2
        // Predicated region
        $region33: #{tpu_custom_call.1} parent=31 // pred_check
          %p791 = pneg %p65
        $region34: #{tpu_custom_call.1} parent=31 // pred_check_branch
          %793 = sbr.rel (%p791) target = $region36
        $region35: #{tpu_custom_call.1} parent=31 // pred_region
          %s794 = sand.u32 %s50, 1
          %s795 = scalar_lea.sflag [#allocation3], %s794
          %s796 = sand.u32 %s50, 1
          %s797 = smul.addr %s796, 256
          %s798 = scalar_lea.vmem [#allocation2], %s797
          %799 = dma.done %s795, 4096
        $region36: #{tpu_custom_call.1} parent=31 // pred_fallthru
          _
      $region32: #{tpu_custom_call.1} parent=5 // pred_fallthru
        _
    $region6: #{tpu_custom_call.1} parent=1 // loop_footer
      %s14 = sadd.s32 1, %s10
    $region7: #{tpu_custom_call.1} parent=1 // loop_footer_branch
      %9 = sbr.rel target = $region3
    $region8: #{tpu_custom_call.1} parent=1 // loop_exit
      _
    %800 = vsyncpa [#allocation3], 1
    %s801 = scalar_lea.sflag [#allocation3], 1
    %802 = vsyncpa %s801, 1

</llo_original>
